<compile_context>
chip_gen: v6e
topology: v6e:2x2x1
jax: 0.10.0
libtpu: 0.0.40
codegen_flags: <defaults>
</compile_context>

<pallas_src>
import math

import jax
import jax.numpy as jnp
from jax.experimental import pallas as pl
from jax.experimental.pallas import tpu as pltpu

_LANE = 128
_LOG2 = math.log(2.0)


def _round_up(a: int, b: int) -> int:
    return ((a + b - 1) // b) * b


def _deny_kernel(w_ref, x0_ref, x1_ref, y0_ref, y1_ref):
    # w_ref: (2,) f32 in SMEM, already log-softmax normalized by the wrapper.
    w0 = w_ref[0]
    w1 = w_ref[1]

    x0 = x0_ref[...].astype(jnp.float32)          # (tr, 128), lane-dense
    x1 = x1_ref[...].astype(jnp.float32)

    a = w0 + x0
    b = w1 + x1
    mx = jnp.maximum(a, b)
    delta = a - b
    # Exact logaddexp, incl. the a == b == +/-inf case (delta is NaN there).
    y0 = jnp.where(jnp.isnan(delta), a + b,
                   mx + jnp.log1p(jnp.exp(-jnp.abs(delta))))
    # logaddexp(t, t) == t + log(2)
    y1 = (w0 + x1) + jnp.float32(_LOG2)

    y0_ref[...] = y0.astype(y0_ref.dtype)
    y1_ref[...] = y1.astype(y1_ref.dtype)


def deny_layer(x0: jax.Array, x1: jax.Array, w: jax.Array,
               *, block_rows: int = 2048):
    """Pallas forward of DenyLayer. x0, x1: (B, Y); w: (2, Y); Y == 1."""
    B, Y = x0.shape
    assert x1.shape == (B, Y)
    assert w.shape == (2, Y)
    assert Y == 1, "DenyLayer asserts x.shape[1] == y_dim == 1"

    dtype = x0.dtype
    itemsize = jnp.dtype(dtype).itemsize
    sub = {4: 8, 2: 16, 1: 32}.get(itemsize, 8)   # sublane packing granularity

    L = B * Y
    rows = pl.cdiv(L, _LANE)
    rows_pad = _round_up(rows, sub)               # minimal: pad rows, not tiles
    l_pad = rows_pad * _LANE

    # Tile rows: as large as block_rows allows, but with >= 2 grid steps when
    # possible so v7x's second TensorCore gets work.  Always a multiple of the
    # sublane granularity; the last (possibly partial) block is clamped by
    # Pallas and its size stays a multiple of `sub`.
    if rows_pad <= 2 * sub:
        tr = rows_pad
    else:
        tr = min(block_rows, rows_pad)
        if tr == rows_pad:
            tr = _round_up(pl.cdiv(rows_pad, 2), sub)
        tr = _round_up(tr, sub)
    grid = (pl.cdiv(rows_pad, tr),)

    # Normalize the parameter pair outside the kernel (2 scalar flops) and
    # ship it to SMEM; the kernel is then a pure streaming elementwise body.
    wf = w.astype(jnp.float32).reshape(2)
    w2 = wf - jnp.logaddexp(wf[0], wf[1])         # (2,) f32

    def to_tiles(a):
        flat = a.reshape(-1)
        if l_pad != L:                            # skip pad when aligned
            flat = jnp.pad(flat, (0, l_pad - L))
        return flat.reshape(rows_pad, _LANE)

    x0t = to_tiles(x0)
    x1t = to_tiles(x1)

    row_spec = pl.BlockSpec((tr, _LANE), lambda i: (i, 0))

    cost = pl.CostEstimate(
        flops=8 * L,
        transcendentals=2 * L,
        bytes_accessed=4 * L * itemsize,
    )

    y0t, y1t = pl.pallas_call(
        _deny_kernel,
        out_shape=(jax.ShapeDtypeStruct((rows_pad, _LANE), dtype),
                   jax.ShapeDtypeStruct((rows_pad, _LANE), dtype)),
        grid=grid,
        in_specs=[pl.BlockSpec(memory_space=pltpu.MemorySpace.SMEM),  # w2
                  row_spec, row_spec],
        out_specs=(row_spec, row_spec),
        compiler_params=pltpu.CompilerParams(
            dimension_semantics=("parallel",),
            vmem_limit_bytes=32 * 1024 * 1024,
            allow_input_fusion=[False, True, True],
        ),
        cost_estimate=cost,
    )(w2, x0t, x1t)

    if l_pad == L:                                # skip slice when aligned
        y0 = y0t.reshape(B, Y)
        y1 = y1t.reshape(B, Y)
    else:
        y0 = y0t.reshape(-1)[:L].reshape(B, Y)
        y1 = y1t.reshape(-1)[:L].reshape(B, Y)
    return y0, y1


def _reference(x0, x1, w):
    w0 = w[0].astype(jnp.float32)
    w1 = w[1].astype(jnp.float32)
    lse = jnp.logaddexp(w0, w1)
    w0 = (w0 - lse).reshape(1, -1)
    w1 = (w1 - lse).reshape(1, -1)
    y0 = jnp.logaddexp(w0 + x0, w1 + x1)
    y1 = jnp.logaddexp(w0 + x1, w0 + x1)
    return y0, y1


if __name__ == "__main__":
    key = jax.random.PRNGKey(0)
    k0, k1, kw, k2, k3 = jax.random.split(key, 5)

    fn = jax.jit(deny_layer)

    # Case 1: small batch (B=64, Y=1) — single (8, 128) tile.
    B, Y = 64, 1
    x0 = jax.random.normal(k0, (B, Y), dtype=jnp.float32)
    x1 = jax.random.normal(k1, (B, Y), dtype=jnp.float32)
    w = jax.random.normal(kw, (2, Y), dtype=jnp.float32)

    y0, y1 = jax.block_until_ready(fn(x0, x1, w))
    r0, r1 = _reference(x0, x1, w)
    assert y0.shape == (B, Y) and y1.shape == (B, Y)
    assert jnp.allclose(y0, r0, atol=1e-5, rtol=1e-5), "y0 mismatch vs reference"
    assert jnp.allclose(y1, r1, atol=1e-5, rtol=1e-5), "y1 mismatch vs reference"

    # Case 2: ragged batch exercising the multi-step grid + partial last block.
    B2 = 5000
    x0b = jax.random.normal(k2, (B2, Y), dtype=jnp.float32)
    x1b = jax.random.normal(k3, (B2, Y), dtype=jnp.float32)
    y0b, y1b = jax.block_until_ready(fn(x0b, x1b, w))
    r0b, r1b = _reference(x0b, x1b, w)
    assert jnp.allclose(y0b, r0b, atol=1e-5, rtol=1e-5), "y0 mismatch (ragged)"
    assert jnp.allclose(y1b, r1b, atol=1e-5, rtol=1e-5), "y1 mismatch (ragged)"

    print("KERNEL_OK")
</pallas_src>

<mosaic_0001>
module attributes {stable_mosaic.version = 11 : i64} {
  func.func @_deny_kernel(%arg0: i32, %arg1: memref<2xf32, #tpu.memory_space<smem>>, %arg2: memref<8x128xf32, #tpu.memory_space<vmem>>, %arg3: memref<8x128xf32, #tpu.memory_space<vmem>>, %arg4: memref<8x128xf32, #tpu.memory_space<vmem>>, %arg5: memref<8x128xf32, #tpu.memory_space<vmem>>) attributes {dimension_semantics = [#tpu.dimension_semantics<parallel>], iteration_bounds = array<i64: 1>, scalar_prefetch = 0 : i64, scratch_operands = 0 : i64, tpu.core_type = #tpu.core_type<tc>, window_params = [{transform_indices = @transform_0, window_bounds = array<i64: 2>}, {transform_indices = @transform_1, window_bounds = array<i64: 8, 128>}, {transform_indices = @transform_2, window_bounds = array<i64: 8, 128>}, {transform_indices = @transform_3, window_bounds = array<i64: 8, 128>}, {transform_indices = @transform_4, window_bounds = array<i64: 8, 128>}]} {
    %c0 = arith.constant 0 : index
    %0 = memref.load %arg1[%c0] : memref<2xf32, #tpu.memory_space<smem>>
    %c1 = arith.constant 1 : index
    %1 = memref.load %arg1[%c1] : memref<2xf32, #tpu.memory_space<smem>>
    %c0_0 = arith.constant 0 : index
    %c0_1 = arith.constant 0 : index
    %2 = vector.load %arg2[%c0_0, %c0_1] : memref<8x128xf32, #tpu.memory_space<vmem>>, vector<8x128xf32>
    %c0_2 = arith.constant 0 : index
    %c0_3 = arith.constant 0 : index
    %3 = vector.load %arg3[%c0_2, %c0_3] : memref<8x128xf32, #tpu.memory_space<vmem>>, vector<8x128xf32>
    %4 = vector.broadcast %0 : f32 to vector<8x128xf32>
    %5 = arith.addf %4, %2 : vector<8x128xf32>
    %6 = vector.broadcast %1 : f32 to vector<8x128xf32>
    %7 = arith.addf %6, %3 : vector<8x128xf32>
    %8 = arith.maximumf %5, %7 : vector<8x128xf32>
    %9 = arith.subf %5, %7 : vector<8x128xf32>
    %10 = arith.cmpf one, %9, %9 : vector<8x128xf32>
    %11 = arith.addf %5, %7 : vector<8x128xf32>
    %12 = math.absf %9 : vector<8x128xf32>
    %cst = arith.constant 0.000000e+00 : f32
    %13 = vector.broadcast %cst : f32 to vector<8x128xf32>
    %14 = arith.subf %13, %12 : vector<8x128xf32>
    %15 = math.exp %14 : vector<8x128xf32>
    %16 = math.log1p %15 : vector<8x128xf32>
    %17 = arith.addf %8, %16 : vector<8x128xf32>
    %18 = arith.select %10, %11, %17 : vector<8x128xi1>, vector<8x128xf32>
    %19 = vector.broadcast %0 : f32 to vector<8x128xf32>
    %20 = arith.addf %19, %3 : vector<8x128xf32>
    %cst_4 = arith.constant 0.693147182 : f32
    %21 = vector.broadcast %cst_4 : f32 to vector<8x128xf32>
    %22 = arith.addf %20, %21 : vector<8x128xf32>
    %c0_5 = arith.constant 0 : index
    %c0_6 = arith.constant 0 : index
    %23 = vector.load %arg4[%c0_5, %c0_6] : memref<8x128xf32, #tpu.memory_space<vmem>>, vector<8x128xf32>
    tpu.vector_store %arg4[%c0_5, %c0_6], %18 {strides = array<i32>} : memref<8x128xf32, #tpu.memory_space<vmem>>, vector<8x128xf32>,
    %c0_7 = arith.constant 0 : index
    %c0_8 = arith.constant 0 : index
    %24 = vector.load %arg5[%c0_7, %c0_8] : memref<8x128xf32, #tpu.memory_space<vmem>>, vector<8x128xf32>
    tpu.vector_store %arg5[%c0_7, %c0_8], %22 {strides = array<i32>} : memref<8x128xf32, #tpu.memory_space<vmem>>, vector<8x128xf32>,
    return
  }
  func.func @transform_0(%arg0: i32) -> i32 {
    %c0_i32 = arith.constant 0 : i32
    %c0_i32_0 = arith.constant 0 : i32
    return %c0_i32 : i32
  }
  func.func @transform_1(%arg0: i32) -> (i32, i32) {
    %c0_i32 = arith.constant 0 : i32
    %c0_i32_0 = arith.constant 0 : i32
    return %arg0, %c0_i32 : i32, i32
  }
  func.func @transform_2(%arg0: i32) -> (i32, i32) {
    %c0_i32 = arith.constant 0 : i32
    %c0_i32_0 = arith.constant 0 : i32
    return %arg0, %c0_i32 : i32, i32
  }
  func.func @transform_3(%arg0: i32) -> (i32, i32) {
    %c0_i32 = arith.constant 0 : i32
    %c0_i32_0 = arith.constant 0 : i32
    return %arg0, %c0_i32 : i32, i32
  }
  func.func @transform_4(%arg0: i32) -> (i32, i32) {
    %c0_i32 = arith.constant 0 : i32
    %c0_i32_0 = arith.constant 0 : i32
    return %arg0, %c0_i32 : i32, i32
  }
}

</mosaic_0001>

<llo_original>
// kernel: deny_layer.2
$region0: #{deny_layer.2}
  #allocation0 [shape = 'u32[]', space=smem, size = 0x4, offset = 0x4, fixed_abs, tag = 'smem constant byte address 0x4 - core index']
  #allocation1 [shape = 'u32[144,128]{1,0:T(1,128)}', space=vmem, size = 0x12000, scoped, tag = 'internal scratch']
  #allocation2 [shape = 'u32[2048]{0}', space=vmem, size = 0x2000, scoped, tag = 'scoped memory for deny_layer.2']
  #allocation3 [shape = 'u32[2048]{0}', space=vmem, size = 0x2000, scoped, tag = 'scoped memory for deny_layer.2']
  #allocation4 [shape = 'u32[2048]{0}', space=vmem, size = 0x2000, scoped, tag = 'scoped memory for deny_layer.2']
  #allocation5 [shape = 'u32[2048]{0}', space=vmem, size = 0x2000, scoped, tag = 'scoped memory for deny_layer.2']
  #allocation6 [shape = 'u32[2048]{0}', space=vmem, size = 0x2000, scoped, tag = 'scoped memory for deny_layer.2']
  #allocation7 [shape = 'u32[2048]{0}', space=vmem, size = 0x2000, scoped, tag = 'scoped memory for deny_layer.2']
  #allocation8 [shape = 'u32[2048]{0}', space=vmem, size = 0x2000, scoped, tag = 'scoped memory for deny_layer.2']
  #allocation9 [shape = 'u32[2048]{0}', space=vmem, size = 0x2000, scoped, tag = 'scoped memory for deny_layer.2']
  #allocation10 [shape = 'u32[2048]{0}', space=vmem, size = 0x2000, scoped, tag = 'scoped memory for deny_layer.2']
  #allocation11 [shape = 'u32[2048]{0}', space=vmem, size = 0x2000, scoped, tag = 'scoped memory for deny_layer.2']
  %s0 = inlined_call_operand.vmem [shape: f32[2], index: 0, kind: input, shape index: {}]
  %s1 = inlined_call_operand.vmem [shape: f32[64], index: 1, kind: input, shape index: {}]
  %s2 = inlined_call_operand.<no memory space> [shape: f32[], index: 2, kind: input, shape index: {}]
  %s3 = inlined_call_operand.vmem [shape: f32[64], index: 3, kind: input, shape index: {}]
  %s4 = inlined_call_operand.vmem [shape: f32[8,128], index: 4, kind: output, shape index: {0}]
  %s5 = inlined_call_operand.vmem [shape: f32[8,128], index: 5, kind: output, shape index: {1}]
  %6 = xla_tuple %s4, %s5
  %s7 = sld [smem:[#allocation0]]
  $region34: #{deny_layer.2} parent=0
    _
  %s9 = ssub.s32 1, %s7
  %s10 = scalar_select 0, %s9, %s7
  %v11 = vstv %s2
  %v12 = vstv %s2
  $region1: #{deny_layer.2} parent=0
    #allocation12 [shape = 'u8[512]{0}', space=smem, size = 0x200, scoped, tag = 'input window, operand 0, single buffered']
    #allocation13 [shape = 's32[1]{0}', space=sflag, size = 0x4, scoped, tag = 'scoped memory for deny_layer.2']
    #allocation14 [shape = 'u8[4096]{0}', space=vmem, size = 0x1000, dematerialized = true, scoped, tag = 'FusionAdapter Buffer %fusion.2 = f32[8,128]{1,0:T(8,128)} fusion(%param_3.1, %param_2.4), kind=kLoop, calls=%fused_computation.2.clone, metadata={op_name="jit(deny_layer)/reshape" stack_frame_id=16}']
    #allocation15 [shape = 'u8[4096]{0}', space=vmem, size = 0x1000, dematerialized = true, scoped, tag = 'FusionAdapter Buffer %fusion.1 = f32[8,128]{1,0:T(8,128)} fusion(%param_1.6, %param_2.4), kind=kLoop, calls=%fused_computation.1.clone, metadata={op_name="jit(deny_layer)/reshape" stack_frame_id=21}']
    %13 = vsyncpa [#allocation13], 0
    // Predicated region
    $region2: #{deny_layer.2} parent=1 // pred_check
      _
    $region3: #{deny_layer.2} parent=1 // pred_check_branch
      %15 = sbr.rel (0) target = $region5
    $region4: #{deny_layer.2} parent=1 // pred_region
      %s17 = ssub.s32 16, 16
      %18 = vsyncadd [#allocation13], %s17
      %s20 = sshll.u32 %s0, 4
      %s21 = int_to_ptr.vmem [resolvable:$true] %s20
      %23 = dma.vmem_to_smem %s21, 16, [#allocation12], [#allocation13]
    $region5: #{deny_layer.2} parent=1 // pred_fallthru
      _
    // Predicated region
    $region6: #{deny_layer.2} parent=1 // pred_check
      _
    $region7: #{deny_layer.2} parent=1 // pred_check_branch
      %25 = sbr.rel (0) target = $region9
    $region8: #{deny_layer.2} parent=1 // pred_region
      _
    $region9: #{deny_layer.2} parent=1 // pred_fallthru
      _
    // Predicated region
    $region10: #{deny_layer.2} parent=1 // pred_check
      _
    $region11: #{deny_layer.2} parent=1 // pred_check_branch
      %27 = sbr.rel (0) target = $region13
    $region12: #{deny_layer.2} parent=1 // pred_region
      _
    $region13: #{deny_layer.2} parent=1 // pred_fallthru
      _
    // Predicated region
    $region14: #{deny_layer.2} parent=1 // pred_check
      _
    $region15: #{deny_layer.2} parent=1 // pred_check_branch
      %29 = sbr.rel (0) target = $region17
    $region16: #{deny_layer.2} parent=1 // pred_region
      %30 = dma.done [#allocation13], 16
    $region17: #{deny_layer.2} parent=1 // pred_fallthru
      _
    %31 = sfence
    %v32 = vld [vmem:[%s3] sm:$0x1]
    %v33 = vlaneseq
    %vm35 = vcmp.lt.s32.totalorder %v33, 64
    %v36 = vsel %vm35, %v32, %v11
    %s38 = ssub.s32 256, 1
    %39 = vst [vmem:[#allocation14] sm:%s38] %v36
    %v40 = vld [vmem:[%s1] sm:$0x1]
    %v41 = vlaneseq
    %vm43 = vcmp.lt.s32.totalorder %v41, 64
    %v44 = vsel %vm43, %v40, %v12
    %s46 = ssub.s32 256, 1
    %47 = vst [vmem:[#allocation15] sm:%s46] %v44
    %s48 = sld [smem:[#allocation12]]
    %s49 = sld [smem:[#allocation12 + $0x1]]
    %v50 = vld [vmem:[#allocation14] sm:$0xff]
    %v51 = vld [vmem:[#allocation15] sm:$0xff]
    %v52 = vstv %s48
    %v53 = vadd.f32 %v52, %v50
    %v54 = vstv %s49
    %v55 = vadd.f32 %v54, %v51
    %v56 = vmax.f32 %v53, %v55
    %v57 = vsub.f32 %v53, %v55
    %vm58 = vcmp.ne.f32.partialorder %v57, %v57
    %v59 = vadd.f32 %v53, %v55
    %v60 = vand.u32 2147483647, %v57
    %v61 = vsub.f32 0.0, %v60
    %v62 = vmul.f32 %v61, 1.442695
    %v63 = vpow.pop %v62
    %v64 = vadd.f32 %v63, 1.0
    %v65 = vlog2.pop %v64
    %v66 = vmul.f32 %v65, 0.6931472
    %v67 = vmul.f32 -0.5, %v63
    %v68 = vadd.f32 %v67, 1.0
    %v69 = vmul.f32 %v68, %v63
    %v70 = vand.u32 2147483647, %v63
    %vm71 = vcmp.lt.f32.partialorder %v70, 0.0004427343
    %v72 = vsel %vm71, %v69, %v66
    %v73 = vadd.f32 %v56, %v72
    %v74 = vsel %vm58, %v59, %v73
    %v75 = vadd.f32 %v52, %v51
    %v76 = vadd.f32 %v75, 0.6931472
    %77 = vst [vmem:[%s4] sm:$0xff] %v74
    %78 = vst [vmem:[%s5] sm:$0xff] %v76
    // Predicated region
    $region18: #{deny_layer.2} parent=1 // pred_check
      _
    $region19: #{deny_layer.2} parent=1 // pred_check_branch
      %80 = sbr.rel (0) target = $region21
    $region20: #{deny_layer.2} parent=1 // pred_region
      _
    $region21: #{deny_layer.2} parent=1 // pred_fallthru
      _
    // Predicated region
    $region22: #{deny_layer.2} parent=1 // pred_check
      _
    $region23: #{deny_layer.2} parent=1 // pred_check_branch
      %82 = sbr.rel (0) target = $region25
    $region24: #{deny_layer.2} parent=1 // pred_region
      _
    $region25: #{deny_layer.2} parent=1 // pred_fallthru
      _
    // Predicated region
    $region26: #{deny_layer.2} parent=1 // pred_check
      _
    $region27: #{deny_layer.2} parent=1 // pred_check_branch
      %84 = sbr.rel (0) target = $region29
    $region28: #{deny_layer.2} parent=1 // pred_region
      _
    $region29: #{deny_layer.2} parent=1 // pred_fallthru
      _
    // Predicated region
    $region30: #{deny_layer.2} parent=1 // pred_check
      _
    $region31: #{deny_layer.2} parent=1 // pred_check_branch
      %86 = sbr.rel (0) target = $region33
    $region32: #{deny_layer.2} parent=1 // pred_region
      _
    $region33: #{deny_layer.2} parent=1 // pred_fallthru
      _
    %87 = vsyncpa [#allocation13], 1

</llo_original>
